<compile_context>
chip_gen: v7x
topology: tpu7x:2x2x1
jax: 0.10.0
libtpu: 0.0.40
codegen_flags: <defaults>
</compile_context>

<pallas_src>
import functools

import jax
import jax.numpy as jnp
import numpy as np
from jax.experimental import pallas as pl
from jax.experimental.pallas import tpu as pltpu

_LANES = 128
_MAX_BLOCK_ROWS = 1024      # 512 KiB per f32 block; 2 inputs x 2 buffers = 2 MiB VMEM
_SINGLE_BLOCK_ROWS = 2048   # slabs up to 1 MiB (f32) handled in a single grid step


def _round_up(v, m):
    return ((v + m - 1) // m) * m


def _hinge_elemwise_kernel(x_ref, y_ref, o_ref, *, margin):
    x = x_ref[...]
    m = jnp.asarray(margin, x.dtype)
    zero = jnp.asarray(0, x.dtype)
    # y carries only a sign (+1 / -1); compare in its native dtype.
    o_ref[...] = jnp.where(y_ref[...] > 0, x, jnp.maximum(zero, m - x))


def _hinge_sum_kernel(x_ref, y_ref, o_ref, acc_ref, *, margin):
    i = pl.program_id(1)

    @pl.when(i == 0)
    def _():
        acc_ref[...] = jnp.zeros_like(acc_ref)

    x = x_ref[...].astype(jnp.float32)
    loss = jnp.where(y_ref[...] > 0, x, jnp.maximum(0.0, margin - x))
    # VPU-only partial reduction into a single (8, 128) vreg accumulator:
    # (R, 128) -> (R//8, 8, 128) summed over the leading axis is just vreg adds.
    block_rows = x_ref.shape[0]
    acc_ref[...] += loss.reshape(block_rows // 8, 8, _LANES).sum(axis=0)

    @pl.when(i == pl.num_programs(1) - 1)
    def _():
        # Single cross-lane/sublane reduce per split, done once at the end.
        o_ref[...] = jnp.sum(acc_ref[...]).reshape(1, 1, 1)


def _layout(n, x_itemsize, y_itemsize):
    """Pick slab rows + block rows satisfying TPU tiling for both dtypes."""
    sub = max(8, 32 // max(x_itemsize, 1), 32 // max(y_itemsize, 1))
    rows_min = -(-n // _LANES)
    if rows_min <= _SINGLE_BLOCK_ROWS:
        block_rows = _round_up(max(rows_min, sub), sub)
        rows = block_rows
    else:
        block_rows = _MAX_BLOCK_ROWS
        rows = _round_up(rows_min, block_rows)
    return rows, block_rows


def _to_slab(flat, rows, fill):
    """Reshape flat vector to (rows, 128); pad with `fill` only if needed."""
    total = rows * _LANES
    n = flat.shape[0]
    if total != n:
        flat = jnp.concatenate(
            [flat, jnp.full((total - n,), fill, flat.dtype)])
    return flat.reshape(rows, _LANES)


def hinge_embedding_loss(x, y, margin=1.0, size_average=True, reduce=True):
    """Pallas implementation of F.hinge_embedding_loss."""
    orig_shape = x.shape
    orig_dtype = x.dtype
    n = x.size

    rows, block_rows = _layout(n, x.dtype.itemsize, y.dtype.itemsize)
    # Padding is (x=0, y=+1) so padded elements contribute exactly 0 loss.
    xs = _to_slab(x.reshape(-1), rows, 0)
    ys = _to_slab(y.reshape(-1), rows, 1)
    nblocks = rows // block_rows

    if reduce:
        # Two partial sums when possible so v7x's two TensorCores each take
        # half of the reduction (single-TC chips just run both serially).
        nsplit = 2 if (nblocks >= 2 and nblocks % 2 == 0) else 1
        bps = nblocks // nsplit

        kernel = functools.partial(_hinge_sum_kernel, margin=float(margin))
        partials = pl.pallas_call(
            kernel,
            out_shape=jax.ShapeDtypeStruct((nsplit, 1, 1), jnp.float32),
            grid_spec=pltpu.PrefetchScalarGridSpec(
                num_scalar_prefetch=0,
                grid=(nsplit, bps),
                in_specs=[
                    pl.BlockSpec((block_rows, _LANES),
                                 lambda c, i: (c * bps + i, 0)),
                    pl.BlockSpec((block_rows, _LANES),
                                 lambda c, i: (c * bps + i, 0)),
                ],
                out_specs=pl.BlockSpec((1, 1, 1), lambda c, i: (c, 0, 0)),
                scratch_shapes=[pltpu.VMEM((8, _LANES), jnp.float32)],
            ),
            compiler_params=pltpu.CompilerParams(
                dimension_semantics=("parallel", "arbitrary")),
        )(xs, ys)

        total = jnp.sum(partials)
        if size_average:
            total = total / jnp.float32(n)
        return total.astype(orig_dtype)
    else:
        kernel = functools.partial(_hinge_elemwise_kernel, margin=float(margin))
        out = pl.pallas_call(
            kernel,
            out_shape=jax.ShapeDtypeStruct((rows, _LANES), orig_dtype),
            grid_spec=pltpu.PrefetchScalarGridSpec(
                num_scalar_prefetch=0,
                grid=(nblocks,),
                in_specs=[
                    pl.BlockSpec((block_rows, _LANES), lambda i: (i, 0)),
                    pl.BlockSpec((block_rows, _LANES), lambda i: (i, 0)),
                ],
                out_specs=pl.BlockSpec((block_rows, _LANES), lambda i: (i, 0)),
            ),
            compiler_params=pltpu.CompilerParams(
                dimension_semantics=("parallel",)),
        )(xs, ys)
        flat = out.reshape(-1)
        if flat.shape[0] != n:
            flat = flat[:n]
        return flat.reshape(orig_shape)


class HingeEmbeddingLoss:
    """Mirror of torch.nn.HingeEmbeddingLoss (no parameters)."""

    def __init__(self, margin=1.0, size_average=True, reduce=True):
        self.margin = margin
        self.size_average = size_average
        self.reduce = reduce

    def __call__(self, input, target):
        return hinge_embedding_loss(input, target, self.margin,
                                    self.size_average, self.reduce)


def _reference(x, y, margin, size_average, reduce):
    xf = np.asarray(x, dtype=np.float64)
    yf = np.asarray(y, dtype=np.float64)
    loss = np.where(yf == 1, xf, np.maximum(0.0, margin - xf))
    if not reduce:
        return loss
    return loss.mean() if size_average else loss.sum()


def _check_all(x, y, name, sum_rtol=1e-5, sum_atol=1e-3):
    out_mean = jax.block_until_ready(
        hinge_embedding_loss(x, y, margin=1.0, size_average=True, reduce=True))
    out_sum = jax.block_until_ready(
        hinge_embedding_loss(x, y, margin=1.0, size_average=False, reduce=True))
    out_none = jax.block_until_ready(
        hinge_embedding_loss(x, y, margin=1.0, reduce=False))

    ref_mean = _reference(x, y, 1.0, True, True)
    ref_sum = _reference(x, y, 1.0, False, True)
    ref_none = _reference(x, y, 1.0, True, False)

    assert np.allclose(np.asarray(out_mean), ref_mean, rtol=1e-4, atol=1e-5), name
    assert np.allclose(np.asarray(out_sum), ref_sum, rtol=sum_rtol, atol=sum_atol), name
    assert out_none.shape == x.shape, name
    assert np.allclose(np.asarray(out_none), ref_none, rtol=1e-5, atol=1e-5), name


if __name__ == "__main__":
    key = jax.random.PRNGKey(0)

    # 1) Default module on the small NCHW example (2048 elems, zero-copy path).
    k1, k2, key = jax.random.split(key, 3)
    shape = (2, 4, 16, 16)
    x = jax.random.normal(k1, shape, dtype=jnp.float32)
    y = jnp.where(jax.random.bernoulli(k2, 0.5, shape), 1.0, -1.0).astype(jnp.float32)
    loss_mod = HingeEmbeddingLoss(margin=1.0, size_average=True, reduce=True)
    out_mean = jax.block_until_ready(loss_mod(x, y))
    assert np.allclose(np.asarray(out_mean), _reference(x, y, 1.0, True, True),
                       rtol=1e-5, atol=1e-5)
    _check_all(x, y, "small")

    # 2) Ragged size (exercises the padded-tail path).
    k1, k2, key = jax.random.split(key, 3)
    shape_r = (3, 5, 7)
    xr = jax.random.normal(k1, shape_r, dtype=jnp.float32)
    yr = jnp.where(jax.random.bernoulli(k2, 0.5, shape_r), 1.0, -1.0).astype(jnp.float32)
    _check_all(xr, yr, "ragged")

    # 3) Larger tensor (exercises multi-block tiling + 2-way reduction split).
    k1, k2, key = jax.random.split(key, 3)
    shape_b = (4, 8, 128, 128)   # 524288 elems -> 4 blocks of (1024, 128)
    xb = jax.random.normal(k1, shape_b, dtype=jnp.float32)
    yb = jnp.where(jax.random.bernoulli(k2, 0.5, shape_b), 1.0, -1.0).astype(jnp.float32)
    _check_all(xb, yb, "large", sum_rtol=1e-5, sum_atol=1e-1)

    print("KERNEL_OK")
</pallas_src>

<mosaic_0001>
module attributes {stable_mosaic.version = 11 : i64} {
  func.func @_hinge_sum_kernel(%arg0: i32, %arg1: i32, %arg2: memref<16x128xf32, #tpu.memory_space<vmem>>, %arg3: memref<16x128xf32, #tpu.memory_space<vmem>>, %arg4: memref<1x1x1xf32, #tpu.memory_space<vmem>>, %arg5: memref<8x128xf32, #tpu.memory_space<vmem>>) attributes {dimension_semantics = [#tpu.dimension_semantics<parallel>, #tpu.dimension_semantics<arbitrary>], iteration_bounds = array<i64: 1, 1>, scalar_prefetch = 0 : i64, scratch_operands = 1 : i64, tpu.core_type = #tpu.core_type<tc>, window_params = [{transform_indices = @transform_0, window_bounds = array<i64: 16, 128>}, {transform_indices = @transform_1, window_bounds = array<i64: 16, 128>}, {transform_indices = @transform_2, window_bounds = array<i64: 1, 1, 1>}]} {
    %c0_i32 = arith.constant 0 : i32
    %0 = arith.cmpi eq, %arg1, %c0_i32 : i32
    %1 = arith.extui %0 : i1 to i32
    %c0_i32_0 = arith.constant 0 : i32
    %2 = arith.cmpi ne, %1, %c0_i32_0 : i32
    scf.if %2 {
      %cst_13 = arith.constant 0.000000e+00 : f32
      %20 = vector.broadcast %cst_13 : f32 to vector<8x128xf32>
      %c0_14 = arith.constant 0 : index
      %c0_15 = arith.constant 0 : index
      %21 = vector.load %arg5[%c0_14, %c0_15] : memref<8x128xf32, #tpu.memory_space<vmem>>, vector<8x128xf32>
      tpu.vector_store %arg5[%c0_14, %c0_15], %20 {strides = array<i32>} : memref<8x128xf32, #tpu.memory_space<vmem>>, vector<8x128xf32>,
    } else {
    }
    %c0 = arith.constant 0 : index
    %c0_1 = arith.constant 0 : index
    %3 = vector.load %arg2[%c0, %c0_1] : memref<16x128xf32, #tpu.memory_space<vmem>>, vector<16x128xf32>
    %c0_2 = arith.constant 0 : index
    %c0_3 = arith.constant 0 : index
    %4 = vector.load %arg3[%c0_2, %c0_3] : memref<16x128xf32, #tpu.memory_space<vmem>>, vector<16x128xf32>
    %cst = arith.constant 0.000000e+00 : f32
    %5 = vector.broadcast %cst : f32 to vector<16x128xf32>
    %6 = arith.cmpf ogt, %4, %5 : vector<16x128xf32>
    %cst_4 = arith.constant 1.000000e+00 : f32
    %7 = vector.broadcast %cst_4 : f32 to vector<16x128xf32>
    %8 = arith.subf %7, %3 : vector<16x128xf32>
    %cst_5 = arith.constant 0.000000e+00 : f32
    %9 = vector.broadcast %cst_5 : f32 to vector<16x128xf32>
    %10 = arith.maximumf %9, %8 : vector<16x128xf32>
    %11 = arith.select %6, %3, %10 : vector<16x128xi1>, vector<16x128xf32>
    %c0_6 = arith.constant 0 : index
    %c0_7 = arith.constant 0 : index
    %12 = vector.load %arg5[%c0_6, %c0_7] : memref<8x128xf32, #tpu.memory_space<vmem>>, vector<8x128xf32>
    %13 = vector.shape_cast %11 : vector<16x128xf32> to vector<2x8x128xf32>
    %cst_8 = arith.constant dense<0.000000e+00> : vector<8x128xf32>
    %14 = vector.multi_reduction <add>, %13, %cst_8 [0] : vector<2x8x128xf32> to vector<8x128xf32>
    %15 = arith.addf %12, %14 : vector<8x128xf32>
    %c0_9 = arith.constant 0 : index
    %c0_10 = arith.constant 0 : index
    %16 = vector.load %arg5[%c0_9, %c0_10] : memref<8x128xf32, #tpu.memory_space<vmem>>, vector<8x128xf32>
    tpu.vector_store %arg5[%c0_9, %c0_10], %15 {strides = array<i32>} : memref<8x128xf32, #tpu.memory_space<vmem>>, vector<8x128xf32>,
    %c0_i32_11 = arith.constant 0 : i32
    %17 = arith.cmpi eq, %arg1, %c0_i32_11 : i32
    %18 = arith.extui %17 : i1 to i32
    %c0_i32_12 = arith.constant 0 : i32
    %19 = arith.cmpi ne, %18, %c0_i32_12 : i32
    scf.if %19 {
      %c0_13 = arith.constant 0 : index
      %c0_14 = arith.constant 0 : index
      %20 = vector.load %arg5[%c0_13, %c0_14] : memref<8x128xf32, #tpu.memory_space<vmem>>, vector<8x128xf32>
      %21 = vector.shape_cast %20 : vector<8x128xf32> to vector<1x8x128xf32>
      %cst_15 = arith.constant dense<0.000000e+00> : vector<1xf32>
      %22 = vector.multi_reduction <add>, %21, %cst_15 [1, 2] : vector<1x8x128xf32> to vector<1xf32>
      %23 = vector.shape_cast %22 : vector<1xf32> to vector<1x1x1xf32>
      %24 = vector.extract %23[0, 0, 0] : f32 from vector<1x1x1xf32>
      %25 = vector.broadcast %24 : f32 to vector<1x1x1xf32>
      %c0_16 = arith.constant 0 : index
      %c0_17 = arith.constant 0 : index
      %c0_18 = arith.constant 0 : index
      %26 = vector.load %arg4[%c0_16, %c0_17, %c0_18] : memref<1x1x1xf32, #tpu.memory_space<vmem>>, vector<1x1x1xf32>
      tpu.vector_store %arg4[%c0_16, %c0_17, %c0_18], %25 {strides = array<i32>} : memref<1x1x1xf32, #tpu.memory_space<vmem>>, vector<1x1x1xf32>,
    } else {
    }
    return
  }
  func.func @transform_0(%arg0: i32, %arg1: i32) -> (i32, i32) {
    %c1_i32 = arith.constant 1 : i32
    %0 = arith.muli %arg0, %c1_i32 : i32
    %1 = arith.addi %0, %arg1 : i32
    %c0_i32 = arith.constant 0 : i32
    %c0_i32_0 = arith.constant 0 : i32
    return %1, %c0_i32 : i32, i32
  }
  func.func @transform_1(%arg0: i32, %arg1: i32) -> (i32, i32) {
    %c1_i32 = arith.constant 1 : i32
    %0 = arith.muli %arg0, %c1_i32 : i32
    %1 = arith.addi %0, %arg1 : i32
    %c0_i32 = arith.constant 0 : i32
    %c0_i32_0 = arith.constant 0 : i32
    return %1, %c0_i32 : i32, i32
  }
  func.func @transform_2(%arg0: i32, %arg1: i32) -> (i32, i32, i32) {
    %c0_i32 = arith.constant 0 : i32
    %c0_i32_0 = arith.constant 0 : i32
    %c0_i32_1 = arith.constant 0 : i32
    return %arg0, %c0_i32, %c0_i32_0 : i32, i32, i32
  }
}

</mosaic_0001>

<llo_original>
// kernel: tpu_custom_call.1
$region0: #{tpu_custom_call.1}
  #allocation0 [shape = 'u32[]', space=smem, size = 0x4, offset = 0x4, fixed_abs, tag = 'smem constant byte address 0x4 - core index']
  #allocation1 [shape = 'u32[144,128]{1,0:T(1,128)}', space=vmem, size = 0x12000, scoped, tag = 'internal scratch']
  #allocation2 [shape = 'f32[8,128]{1,0:T(8,128)}', space=vmem, size = 0x1000, scoped, tag = 'scratch operand']
  %s0 = inlined_call_operand.hbm [shape: f32[16,128], index: 0, kind: input, shape index: {}]
  %s1 = inlined_call_operand.hbm [shape: f32[16,128], index: 1, kind: input, shape index: {}]
  %s2 = inlined_call_operand.hbm [shape: f32[1,1,1], index: 2, kind: output, shape index: {}]
  %s3 = sld [smem:[#allocation0]]
  $region34: #{tpu_custom_call.1} parent=0
    _
  %s5 = ssub.s32 1, %s3
  %s6 = scalar_select 0, %s5, %s3
  $region1: #{tpu_custom_call.1} parent=0
    #allocation3 [shape = 'u8[8192]{0}', space=vmem, size = 0x2000, scoped, tag = 'input window, operand 0, single buffered']
    #allocation4 [shape = 's32[1]{0}', space=sflag, size = 0x4, scoped, tag = 'scoped memory for tpu_custom_call.1']
    #allocation5 [shape = 's32[1]{0}', space=sflag, size = 0x4, scoped, tag = 'scoped memory for tpu_custom_call.1']
    #allocation6 [shape = 'u8[8192]{0}', space=vmem, size = 0x2000, scoped, tag = 'input window, operand 1, single buffered']
    #allocation7 [shape = 's32[1]{0}', space=sflag, size = 0x4, scoped, tag = 'scoped memory for tpu_custom_call.1']
    #allocation8 [shape = 'u8[512]{0}', space=vmem, size = 0x400, scoped, tag = 'output window, operand 0, single buffered']
    %7 = vsyncpa [#allocation4], 0
    %8 = vsyncpa [#allocation7], 0
    %9 = vsyncpa [#allocation5], 0
    // Predicated region
    $region2: #{tpu_custom_call.1} parent=1 // pred_check
      _
    $region3: #{tpu_custom_call.1} parent=1 // pred_check_branch
      %11 = sbr.rel (0) target = $region5
    $region4: #{tpu_custom_call.1} parent=1 // pred_region
      %s12 = sadd.s32 0, 0
      %s13 = smul.u32 2, %s12
      %s15 = ssub.s32 256, 256
      %16 = vsyncadd [#allocation4], %s15
      %s17 = smul.addr %s13, 128
      %s18 = scalar_lea.hbm %s0, %s17
      %s19 = sshll.u32 [#allocation3], 4
      %s20 = int_to_ptr.vmem [resolvable:$true] %s19
      %25 = dma.hbm_to_vmem [thread:$0]  %s18, 256, %s20, [#allocation4], 128, 128, 8
    $region5: #{tpu_custom_call.1} parent=1 // pred_fallthru
      _
    // Predicated region
    $region6: #{tpu_custom_call.1} parent=1 // pred_check
      _
    $region7: #{tpu_custom_call.1} parent=1 // pred_check_branch
      %27 = sbr.rel (0) target = $region9
    $region8: #{tpu_custom_call.1} parent=1 // pred_region
      %s28 = sadd.s32 0, 0
      %s29 = smul.u32 2, %s28
      %s31 = ssub.s32 256, 256
      %32 = vsyncadd [#allocation7], %s31
      %s33 = smul.addr %s29, 128
      %s34 = scalar_lea.hbm %s1, %s33
      %s35 = sshll.u32 [#allocation6], 4
      %s36 = int_to_ptr.vmem [resolvable:$true] %s35
      %41 = dma.hbm_to_vmem [thread:$0]  %s34, 256, %s36, [#allocation7], 128, 128, 8
    $region9: #{tpu_custom_call.1} parent=1 // pred_fallthru
      _
    // Predicated region
    $region10: #{tpu_custom_call.1} parent=1 // pred_check
      _
    $region11: #{tpu_custom_call.1} parent=1 // pred_check_branch
      %43 = sbr.rel (0) target = $region13
    $region12: #{tpu_custom_call.1} parent=1 // pred_region
      %44 = dma.done [#allocation4], 256
    $region13: #{tpu_custom_call.1} parent=1 // pred_fallthru
      _
    // Predicated region
    $region14: #{tpu_custom_call.1} parent=1 // pred_check
      _
    $region15: #{tpu_custom_call.1} parent=1 // pred_check_branch
      %46 = sbr.rel (0) target = $region17
    $region16: #{tpu_custom_call.1} parent=1 // pred_region
      %47 = dma.done [#allocation7], 256
    $region17: #{tpu_custom_call.1} parent=1 // pred_fallthru
      _
    %s48 = sadd.s32 0, 0
    %s49 = smul.u32 2, %s48
    %s50 = sadd.s32 0, 0
    %s51 = smul.u32 2, %s50
    %p52 = scmp.eq.s32.totalorder 0, 0
    // Predicated region
    $region18: #{tpu_custom_call.1} parent=1 // pred_check
      %p53 = pneg %p52
    $region19: #{tpu_custom_call.1} parent=1 // pred_check_branch
      %55 = sbr.rel (%p53) target = $region21
    $region20: #{tpu_custom_call.1} parent=1 // pred_region
      %56 = vst [vmem:[#allocation2] sm:$0xff] 0.0
    $region21: #{tpu_custom_call.1} parent=1 // pred_fallthru
      _
    %v57 = vld [vmem:[#allocation3] sm:$0xff]
    %v58 = vld [vmem:[#allocation3 + $0x8] sm:$0xff]
    %v59 = vld [vmem:[#allocation6] sm:$0xff]
    %v60 = vld [vmem:[#allocation6 + $0x8] sm:$0xff]
    %vm61 = vcmp.gt.f32.partialorder %v59, 0.0
    %vm62 = vcmp.gt.f32.partialorder %v60, 0.0
    %v63 = vsub.f32 1.0, %v57
    %v64 = vsub.f32 1.0, %v58
    %v65 = vmax.f32 %v63, 0.0
    %v66 = vmax.f32 %v64, 0.0
    %v67 = vsel %vm61, %v57, %v65
    %v68 = vsel %vm62, %v58, %v66
    %v69 = vld [vmem:[#allocation2] sm:$0xff]
    %v70 = vadd.f32 %v67, %v68
    %v71 = vadd.f32 %v69, %v70
    %72 = vst [vmem:[#allocation2] sm:$0xff] %v71
    // Predicated region
    $region22: #{tpu_custom_call.1} parent=1 // pred_check
      %p73 = pneg %p52
    $region23: #{tpu_custom_call.1} parent=1 // pred_check_branch
      %75 = sbr.rel (%p73) target = $region25
    $region24: #{tpu_custom_call.1} parent=1 // pred_region
      %v76 = vld [vmem:[#allocation2] sm:$0xff]
      %77 = vadd.xlane.f32.xlu0 %v76
      %v78 = vpop.xlane.xlu0 %77
      %v79 = vrot.slane %v78, 4
      %v80 = vadd.f32 %v78, %v79
      %v81 = vrot.slane %v80, 2
      %v82 = vadd.f32 %v80, %v81
      %v83 = vrot.slane %v82, 1
      %v84 = vadd.f32 %v82, %v83
      %s85 = vtos %v84
      %v86 = vstv %s85
      %vm87 = vcmask 0
      %88 = vst.msk [vmem:[#allocation8] sm:$0x1] %vm87, %v86
    $region25: #{tpu_custom_call.1} parent=1 // pred_fallthru
      _
    // Predicated region
    $region26: #{tpu_custom_call.1} parent=1 // pred_check
      _
    $region27: #{tpu_custom_call.1} parent=1 // pred_check_branch
      %90 = sbr.rel (0) target = $region29
    $region28: #{tpu_custom_call.1} parent=1 // pred_region
      %s92 = ssub.s32 16, 16
      %93 = vsyncadd [#allocation5], %s92
      %s95 = sshll.u32 [#allocation8], 4
      %s96 = int_to_ptr.vmem [resolvable:$true] %s95
      %98 = dma.vmem_to_hbm [thread:$0]  %s96, 16, %s2, [#allocation5]
    $region29: #{tpu_custom_call.1} parent=1 // pred_fallthru
      _
    // Predicated region
    $region30: #{tpu_custom_call.1} parent=1 // pred_check
      _
    $region31: #{tpu_custom_call.1} parent=1 // pred_check_branch
      %100 = sbr.rel (0) target = $region33
    $region32: #{tpu_custom_call.1} parent=1 // pred_region
      %101 = dma.done [#allocation5], 16
    $region33: #{tpu_custom_call.1} parent=1 // pred_fallthru
      _
    %102 = vsyncpa [#allocation4], 1
    %103 = vsyncpa [#allocation7], 1
    %104 = vsyncpa [#allocation5], 1

</llo_original>
